<compile_context>
chip_gen: v5e
topology: v5e:2x2
jax: 0.10.0
libtpu: 0.0.40
codegen_flags: <defaults>
</compile_context>

<pallas_src>
import jax
import jax.numpy as jnp
from jax.experimental import pallas as pl
from jax.experimental.pallas import tpu as pltpu


def _round_up(x: int, m: int) -> int:
    return ((x + m - 1) // m) * m


# ---------------------------------------------------------------------------
# AutoBaselineNetwork:  y = x @ W.T  (rank-1 broadcast, purely HBM-store bound)
# ---------------------------------------------------------------------------
def _autobaseline_kernel(x_ref, w_ref, o_ref):
    # x_ref: (tb, 1), w_ref: (1, tn), o_ref: (tb, tn).
    # Single VPU broadcast multiply; interior output stores are lane-dense.
    o_ref[...] = x_ref[...] * w_ref[...]


def autobaseline_forward(x, weight, *, tile_b: int = 512, tile_n: int = 2048):
    """x: (B, 1) f32; weight: (num_inputs, 1) f32 (PyTorch nn.Linear(1, N).weight)."""
    assert tile_b % 8 == 0 and tile_n % 128 == 0
    B = x.shape[0]
    N = weight.shape[0]
    x = x.astype(jnp.float32).reshape(B, 1)
    w_row = weight.astype(jnp.float32).reshape(1, N)

    # Block dims: either the full array dim (always legal) or an (8,128)-aligned
    # tile; edge blocks are masked by the Pallas runtime (no host pad/slice).
    tb = B if B <= tile_b else tile_b
    tn = N if N <= tile_n else tile_n
    grid = (pl.cdiv(B, tb), pl.cdiv(N, tn))

    # NOTE: if an xprof/bundle dump ever shows exposed output writeback on v7x,
    # add pipeline_mode=pl.Buffered(3) to the out_spec (cheap, a few MiB VMEM).
    return pl.pallas_call(
        _autobaseline_kernel,
        out_shape=jax.ShapeDtypeStruct((B, N), jnp.float32),
        grid=grid,
        in_specs=[
            pl.BlockSpec((tb, 1), lambda i, j: (i, 0)),   # per-row scalars
            pl.BlockSpec((1, tn), lambda i, j: (0, j)),   # baseline row
        ],
        out_specs=pl.BlockSpec((tb, tn), lambda i, j: (i, j)),
        compiler_params=pltpu.CompilerParams(
            # No reduction axis -> both dims parallel (2x on v7x's dual TCs).
            dimension_semantics=("parallel", "parallel"),
        ),
    )(x, w_row)


def get_autobaseline(weight):
    """CombinedBaselineNetwork.get_autobaseline(): model(ones(1)) == weight[:, 0]."""
    return weight.astype(jnp.float32).reshape(-1)


# ---------------------------------------------------------------------------
# Frozen classification model (rank-1 input folded through the first layer).
# TODO(synk): `NeuralNetwork.predict` is not defined in the provided spec; a
# frozen 2-layer MLP (Linear -> ReLU -> Linear) stand-in is used here.
# ---------------------------------------------------------------------------
def _classifier_kernel(x_ref, c_ref, b1_ref, w2_ref, b2_ref, o_ref):
    # x_ref: (tb, 1); c_ref/b1_ref: (1, H); w2_ref: (H, Cp); b2_ref: (1, Cp).
    # h = relu(y @ w1.T + b1) with y = x * baseline_row  ==  relu(x * c + b1),
    # where c = baseline_row @ w1.T is precomputed (frozen).  No y re-read.
    h = jnp.maximum(x_ref[...] * c_ref[...] + b1_ref[...], 0.0)          # (tb, H)
    o_ref[...] = (
        jnp.dot(h, w2_ref[...], preferred_element_type=jnp.float32) + b2_ref[...]
    )


def prepare_classifier_params(baseline_weight, w1, b1, w2, b2):
    """One-time (module-init) preprocessing of the FROZEN classifier.

    PyTorch layouts: w1 (H, N), b1 (H,), w2 (C, H), b2 (C,).  Folds the rank-1
    autobaseline through the first layer and lane-pads the output layer to a
    multiple of 128 so logits stores are unmasked.  Not in the per-call path.
    """
    baseline_row = baseline_weight.astype(jnp.float32).reshape(1, -1)    # (1, N)
    w1t = w1.astype(jnp.float32).T                                       # (N, H)
    c = baseline_row @ w1t                                               # (1, H)
    b1r = b1.astype(jnp.float32).reshape(1, -1)                          # (1, H)
    w2t = w2.astype(jnp.float32).T                                       # (H, C)
    b2r = b2.astype(jnp.float32).reshape(1, -1)                          # (1, C)
    num_classes = w2t.shape[1]
    cp = _round_up(num_classes, 128)
    if cp != num_classes:
        w2t = jnp.pad(w2t, ((0, 0), (0, cp - num_classes)))
        b2r = jnp.pad(b2r, ((0, 0), (0, cp - num_classes)))
    return {"c": c, "b1": b1r, "w2t": w2t, "b2": b2r, "num_classes": num_classes}


def classifier_predict(x, params, *, tile_b: int = 512):
    """classification_model.predict(autobaseline(x)) with the rank-1 fold applied."""
    assert tile_b % 8 == 0
    B = x.shape[0]
    x = x.astype(jnp.float32).reshape(B, 1)
    c, b1, w2t, b2 = params["c"], params["b1"], params["w2t"], params["b2"]
    H = c.shape[1]
    Cp = w2t.shape[1]
    num_classes = params["num_classes"]

    tb = B if B <= tile_b else tile_b
    grid = (pl.cdiv(B, tb),)

    logits = pl.pallas_call(
        _classifier_kernel,
        out_shape=jax.ShapeDtypeStruct((B, Cp), jnp.float32),
        grid=grid,
        in_specs=[
            pl.BlockSpec((tb, 1), lambda i: (i, 0)),    # x tile (pipelined over B)
            pl.BlockSpec((1, H), lambda i: (0, 0)),     # folded first layer (resident)
            pl.BlockSpec((1, H), lambda i: (0, 0)),     # b1 (resident)
            pl.BlockSpec((H, Cp), lambda i: (0, 0)),    # output layer (resident)
            pl.BlockSpec((1, Cp), lambda i: (0, 0)),    # b2 (resident)
        ],
        out_specs=pl.BlockSpec((tb, Cp), lambda i: (i, 0)),  # lane-dense stores
        compiler_params=pltpu.CompilerParams(
            dimension_semantics=("parallel",),
        ),
    )(x, c, b1, w2t, b2)

    if Cp != num_classes:
        logits = logits[:, :num_classes]   # Cp is tiny; negligible copy
    return logits


def combined_baseline_forward(x, baseline_weight, classifier_params):
    """CombinedBaselineNetwork.forward: returns (autobaseline_out, classifier_out)."""
    y = autobaseline_forward(x, baseline_weight)
    # Classifier consumes x directly (rank-1 fold) -> no HBM re-read of y.
    logits = classifier_predict(x, classifier_params)
    return y, logits


if __name__ == "__main__":
    key = jax.random.PRNGKey(0)
    k_base, k_x, k_w1, k_b1, k_w2, k_b2, k_xl, k_wl, k_xc = jax.random.split(key, 9)

    num_inputs = 32
    batch = 8
    hidden = 64
    num_classes = 16

    # AutoBaselineNetwork weight: PyTorch nn.Linear(1, N).weight shape (N, 1).
    initial_baseline = jax.random.normal(k_base, (num_inputs,), dtype=jnp.float32)
    baseline_weight = initial_baseline.reshape(num_inputs, 1)

    # Frozen classifier stand-in parameters (PyTorch (out, in) layout).
    w1 = jax.random.normal(k_w1, (hidden, num_inputs), dtype=jnp.float32) * 0.1
    b1 = jax.random.normal(k_b1, (hidden,), dtype=jnp.float32) * 0.1
    w2 = jax.random.normal(k_w2, (num_classes, hidden), dtype=jnp.float32) * 0.1
    b2 = jax.random.normal(k_b2, (num_classes,), dtype=jnp.float32) * 0.1

    # One-time frozen-weight preprocessing ("module init", out of the hot path).
    classifier_params = prepare_classifier_params(baseline_weight, w1, b1, w2, b2)

    # Module input: in_features = 1.
    x = jax.random.normal(k_x, (batch, 1), dtype=jnp.float32)

    y_base, logits = combined_baseline_forward(x, baseline_weight, classifier_params)
    jax.block_until_ready((y_base, logits))

    # References (broadcast form is bit-identical to x @ W.T for K=1).
    y_ref = x * baseline_weight.reshape(1, num_inputs)
    h_ref = jnp.maximum(y_ref @ w1.T + b1, 0.0)
    logits_ref = h_ref @ w2.T + b2

    assert y_base.shape == (batch, num_inputs)
    assert logits.shape == (batch, num_classes)
    assert jnp.allclose(y_base, y_ref, atol=1e-6, rtol=1e-6), "autobaseline mismatch"
    assert jnp.allclose(logits, logits_ref, atol=1e-3, rtol=1e-3), "classifier mismatch"

    # get_autobaseline == model(ones(1)) == the baseline vector itself.
    assert jnp.allclose(get_autobaseline(baseline_weight), initial_baseline)

    # Exercise the edge-masked tiled autobaseline path (no pad / slice-back):
    # B=1000 -> two 512-row blocks (second masked), N=300 -> one full-width
    # block with a masked lane tail.
    x_big = jax.random.normal(k_xl, (1000, 1), dtype=jnp.float32)
    w_big = jax.random.normal(k_wl, (300, 1), dtype=jnp.float32)
    y_big = jax.block_until_ready(autobaseline_forward(x_big, w_big))
    assert y_big.shape == (1000, 300)
    assert jnp.allclose(y_big, x_big * w_big.reshape(1, 300), atol=1e-6, rtol=1e-6), (
        "tiled autobaseline mismatch"
    )

    # Exercise the B-gridded classifier path (2 blocks, lane-dense logits stores).
    x_c = jax.random.normal(k_xc, (1000, 1), dtype=jnp.float32)
    logits_c = jax.block_until_ready(classifier_predict(x_c, classifier_params))
    y_c_ref = x_c * baseline_weight.reshape(1, num_inputs)
    logits_c_ref = jnp.maximum(y_c_ref @ w1.T + b1, 0.0) @ w2.T + b2
    assert logits_c.shape == (1000, num_classes)
    assert jnp.allclose(logits_c, logits_c_ref, atol=1e-3, rtol=1e-3), (
        "gridded classifier mismatch"
    )

    print("KERNEL_OK")
</pallas_src>

<mosaic_0001>
module attributes {stable_mosaic.version = 11 : i64} {
  func.func @_autobaseline_kernel(%arg0: i32, %arg1: i32, %arg2: memref<8x1xf32, #tpu.memory_space<vmem>>, %arg3: memref<1x32xf32, #tpu.memory_space<vmem>>, %arg4: memref<8x32xf32, #tpu.memory_space<vmem>>) attributes {dimension_semantics = [#tpu.dimension_semantics<parallel>, #tpu.dimension_semantics<parallel>], iteration_bounds = array<i64: 1, 1>, scalar_prefetch = 0 : i64, scratch_operands = 0 : i64, tpu.core_type = #tpu.core_type<tc>, window_params = [{transform_indices = @transform_0, window_bounds = array<i64: 8, 1>}, {transform_indices = @transform_1, window_bounds = array<i64: 1, 32>}, {transform_indices = @transform_2, window_bounds = array<i64: 8, 32>}]} {
    %c0 = arith.constant 0 : index
    %c0_0 = arith.constant 0 : index
    %0 = vector.load %arg2[%c0, %c0_0] : memref<8x1xf32, #tpu.memory_space<vmem>>, vector<8x1xf32>
    %c0_1 = arith.constant 0 : index
    %c0_2 = arith.constant 0 : index
    %1 = vector.load %arg3[%c0_1, %c0_2] : memref<1x32xf32, #tpu.memory_space<vmem>>, vector<1x32xf32>
    %2 = vector.broadcast %0 : vector<8x1xf32> to vector<8x32xf32>
    %3 = vector.broadcast %1 : vector<1x32xf32> to vector<8x32xf32>
    %4 = arith.mulf %2, %3 : vector<8x32xf32>
    %c0_3 = arith.constant 0 : index
    %c0_4 = arith.constant 0 : index
    %5 = vector.load %arg4[%c0_3, %c0_4] : memref<8x32xf32, #tpu.memory_space<vmem>>, vector<8x32xf32>
    tpu.vector_store %arg4[%c0_3, %c0_4], %4 {strides = array<i32>} : memref<8x32xf32, #tpu.memory_space<vmem>>, vector<8x32xf32>,
    return
  }
  func.func @transform_0(%arg0: i32, %arg1: i32) -> (i32, i32) {
    %c0_i32 = arith.constant 0 : i32
    %c0_i32_0 = arith.constant 0 : i32
    return %arg0, %c0_i32 : i32, i32
  }
  func.func @transform_1(%arg0: i32, %arg1: i32) -> (i32, i32) {
    %c0_i32 = arith.constant 0 : i32
    %c0_i32_0 = arith.constant 0 : i32
    return %c0_i32, %arg1 : i32, i32
  }
  func.func @transform_2(%arg0: i32, %arg1: i32) -> (i32, i32) {
    %c0_i32 = arith.constant 0 : i32
    return %arg0, %arg1 : i32, i32
  }
}

</mosaic_0001>

<llo_original>
// kernel: tpu_custom_call.1
$region0: #{tpu_custom_call.1}
  #allocation0 [shape = 'u32[]', space=smem, size = 0x4, offset = 0x4, fixed_abs, tag = 'smem constant byte address 0x4 - core index']
  #allocation1 [shape = 'u32[72,128]{1,0:T(1,128)}', space=vmem, size = 0x9000, scoped, tag = 'internal scratch']
  %s0 = inlined_call_operand.vmem [shape: f32[8,1], index: 0, kind: input, shape index: {}]
  %s1 = inlined_call_operand.vmem [shape: f32[1,32], index: 1, kind: input, shape index: {}]
  %s2 = inlined_call_operand.hbm [shape: f32[8,32], index: 2, kind: output, shape index: {}]
  %s3 = sld [smem:[#allocation0]]
  $region18: #{tpu_custom_call.1} parent=0
    _
  %s5 = ssub.s32 1, %s3
  %s6 = scalar_select 0, %s5, %s3
  $region1: #{tpu_custom_call.1} parent=0
    #allocation2 [shape = 'u8[4096]{0}', space=vmem, size = 0x1000, scoped, tag = 'output window, operand 0, single buffered']
    #allocation3 [shape = 's32[1]{0}', space=sflag, size = 0x4, scoped, tag = 'scoped memory for tpu_custom_call.1']
    %7 = vsyncpa [#allocation3], 0
    // Predicated region
    $region2: #{tpu_custom_call.1} parent=1 // pred_check
      _
    $region3: #{tpu_custom_call.1} parent=1 // pred_check_branch
      %9 = sbr.rel (0) target = $region5
    $region4: #{tpu_custom_call.1} parent=1 // pred_region
      _
    $region5: #{tpu_custom_call.1} parent=1 // pred_fallthru
      _
    // Predicated region
    $region6: #{tpu_custom_call.1} parent=1 // pred_check
      _
    $region7: #{tpu_custom_call.1} parent=1 // pred_check_branch
      %11 = sbr.rel (0) target = $region9
    $region8: #{tpu_custom_call.1} parent=1 // pred_region
      _
    $region9: #{tpu_custom_call.1} parent=1 // pred_fallthru
      _
    %v12 = vld [vmem:[%s0] sm:$0xff]
    %v13 = vld [vmem:[%s1] sm:$0x1]
    %15 = vset.pattern.permute.xlu0 0
    %16 = vperm.xlu0 %15, %v12
    %v17 = vpop.permute.xlu0 %16
    %v20 = vperm.slane %v13, 0
    %v22 = vmul.f32 %v17, %v20
    %vm23 = vcmask 261120
    %24 = vst.msk [vmem:[#allocation2] sm:$0xff] %vm23, %v22
    // Predicated region
    $region10: #{tpu_custom_call.1} parent=1 // pred_check
      _
    $region11: #{tpu_custom_call.1} parent=1 // pred_check_branch
      %26 = sbr.rel (0) target = $region13
    $region12: #{tpu_custom_call.1} parent=1 // pred_region
      %28 = vsyncadd [#allocation3], 0
      %s30 = sshll.u32 [#allocation2], 4
      %s31 = int_to_ptr.vmem [resolvable:$true] %s30
      %s32 = sshll.u32 %s2, 4
      %s33 = int_to_ptr.hbm [resolvable:$true] %s32
      %35 = dma.vmem_to_hbm [thread:$0]  %s31, 128, %s33, [#allocation3]
    $region13: #{tpu_custom_call.1} parent=1 // pred_fallthru
      _
    // Predicated region
    $region14: #{tpu_custom_call.1} parent=1 // pred_check
      _
    $region15: #{tpu_custom_call.1} parent=1 // pred_check_branch
      %37 = sbr.rel (0) target = $region17
    $region16: #{tpu_custom_call.1} parent=1 // pred_region
      %39 = dma.done [#allocation3], 128
    $region17: #{tpu_custom_call.1} parent=1 // pred_fallthru
      _
    %40 = vsyncpa [#allocation3], 1

</llo_original>
